<compile_context>
chip_gen: v6e
topology: v6e:2x2x1
jax: 0.10.0
libtpu: 0.0.40
codegen_flags: <defaults>
</compile_context>

<pallas_src>
import functools
import math

import jax
import jax.numpy as jnp
from jax.experimental import pallas as pl
from jax.experimental.pallas import tpu as pltpu

EPS = 1e-07
_LANES = 128
_SUBLANES = 8


def _round_up(x, n):
    return ((x + n - 1) // n) * n


def _device_kind():
    try:
        return jax.devices()[0].device_kind.lower()
    except Exception:
        return ""


def _contrast_loss_kernel(x_ref, out_ref, *, tb, bsz, tiles_per_shard, c_den):
    """Accumulates  sum(log(x + c_den)) - sum(log(x[:, 0]))  over the rows
    owned by this core shard.  Constants / negate / normalize are folded into
    the wrapper finalize.

    x_ref  : (tb, K+1) tile of NCE scores in their natural layout
    out_ref: (1, 8, 128) per-shard output block; acts as the accumulator
             (same block index for every reduction step t).
    """
    c = pl.program_id(0)          # core shard ("parallel")
    t = pl.program_id(1)          # row tile within the shard ("arbitrary")

    @pl.when(t == 0)
    def _init():
        out_ref[...] = jnp.zeros_like(out_ref)

    x = x_ref[...].astype(jnp.float32)              # (tb, K+1)
    den_log = jnp.log(x + c_den)                    # pos + neg denominators
    pos_log = jnp.log(x[:, 0:1])                    # positive numerators

    row_base = (c * tiles_per_shard + t) * tb
    is_full = row_base + tb <= bsz                  # scalar predicate

    # Fast path: steady-state tiles need no index math or masking at all.
    @pl.when(is_full)
    def _full():
        out_ref[...] += jnp.sum(den_log) - jnp.sum(pos_log)

    # Slow path: only the ragged tail (and fully out-of-range duplicate tiles
    # produced by the clamped index_map) pays for the iota + mask.
    @pl.when(jnp.logical_not(is_full))
    def _tail():
        rows = jax.lax.broadcasted_iota(jnp.int32, (tb, 1), 0) + row_base
        valid = rows < bsz                          # (tb, 1) row mask
        d = jnp.where(valid, jnp.sum(den_log, axis=1, keepdims=True), 0.0)
        p = jnp.where(valid, pos_log, 0.0)
        out_ref[...] += jnp.sum(d) - jnp.sum(p)


def contrast_loss(x, n_data, *, num_core_shards=None, tile_bytes=None):
    """Pallas implementation of ContrastLoss.forward (Eq 18 of CRD).

    x: (bsz, K+1) or (bsz, K+1, 1) array of NCE scores (f32 or bf16).
    Returns loss of shape (1,), matching the PyTorch module.
    """
    if x.ndim == 3:
        # TODO(synk): have the producer (ContrastMemory) emit (bsz, K+1)
        # directly; this squeeze of a lane-padded (bsz, K+1, 1) array is a
        # hidden relayout copy.
        x = jnp.squeeze(x, axis=-1)
    bsz, k1 = x.shape
    m = k1 - 1
    noise = m / float(n_data)                       # m * Pn
    c_den = noise + EPS

    kind = _device_kind()
    nc = num_core_shards
    if nc is None:
        # 2 TensorCores per chip only on v7x; nc=1 on single-TC v5e/v6e so the
        # leading axis is not a useless sequential loop.
        nc = 2 if "v7" in kind else 1
    if tile_bytes is None:
        # ~2 MiB tiles on v5e (16 MiB scoped-VMEM default), ~4 MiB on v6e/v7x.
        tile_bytes = (4 << 20) if ("v6" in kind or "v7" in kind) else (2 << 20)

    # Row-tile size for the natural (bsz, K+1) layout (full last dim per
    # block; the HBM layout is already lane-padded, so no relayout pass).
    row_bytes = _round_up(k1, _LANES) * max(int(x.dtype.itemsize), 1)
    tb = max(_SUBLANES,
             (tile_bytes // max(row_bytes, 1)) // _SUBLANES * _SUBLANES)
    tb = min(tb, _round_up(bsz, _SUBLANES))

    tiles_total = pl.cdiv(bsz, tb)
    tiles_per_shard = pl.cdiv(tiles_total, nc)

    def _x_index(c, t):
        # Clamp so duplicate trailing tiles (masked to zero in-kernel) still
        # DMA in-range data.
        return (jnp.minimum(c * tiles_per_shard + t, tiles_total - 1), 0)

    kernel = functools.partial(
        _contrast_loss_kernel, tb=tb, bsz=bsz,
        tiles_per_shard=tiles_per_shard, c_den=c_den)

    total = bsz * k1
    partials = pl.pallas_call(
        kernel,
        out_shape=jax.ShapeDtypeStruct((nc, _SUBLANES, _LANES), jnp.float32),
        grid_spec=pltpu.PrefetchScalarGridSpec(
            num_scalar_prefetch=0,
            grid=(nc, tiles_per_shard),
            in_specs=[pl.BlockSpec((tb, k1), _x_index)],
            out_specs=pl.BlockSpec((1, _SUBLANES, _LANES),
                                   lambda c, t: (c, 0, 0)),
        ),
        # NOTE(v7x): if "parallel" does not shard the leading axis across the
        # two TensorCores, switch it to pltpu.CORE_PARALLEL.
        compiler_params=pltpu.CompilerParams(
            dimension_semantics=("parallel", "arbitrary")),
        cost_estimate=pl.CostEstimate(
            flops=3 * total,
            transcendentals=total + bsz,
            bytes_accessed=total * int(x.dtype.itemsize)),
    )(x)

    # Finalize (tiny scalar glue): add the closed-form constant for the
    # negative-term numerators, negate and normalize by the batch size.
    #   loss = ( S - bsz*m*log(m*Pn) ) / bsz,  S = sum(log(x+c)) - sum(log(x_pos))
    s = jnp.sum(partials[:, 0, 0])
    const = float(bsz * m) * math.log(noise) if m > 0 else 0.0
    loss = (s - const) / bsz
    return loss.reshape(1)


def _reference_contrast_loss(x, n_data):
    """Pure-JAX reference mirroring the PyTorch forward exactly."""
    if x.ndim == 3:
        x = x[..., 0]
    bsz, k1 = x.shape
    m = k1 - 1
    pn = 1.0 / float(n_data)
    p_pos = x[:, 0]
    log_d1 = jnp.log(p_pos / (p_pos + m * pn + EPS))
    p_neg = x[:, 1:]
    log_d0 = jnp.log((m * pn) / (p_neg + m * pn + EPS))
    loss = -(jnp.sum(log_d1) + jnp.sum(log_d0)) / bsz
    return loss.reshape(1)


if __name__ == "__main__":
    key = jax.random.PRNGKey(0)
    k1_, k2_, k3_ = jax.random.split(key, 3)

    # Case 1: (bsz, K+1, 1) layout exactly as produced by ContrastMemory.
    bsz, k1, n_data = 8, 17, 128                    # 1 positive + 16 negatives
    x = jax.random.uniform(k1_, (bsz, k1, 1), dtype=jnp.float32,
                           minval=0.01, maxval=1.0)
    loss = jax.block_until_ready(contrast_loss(x, n_data))
    ref = _reference_contrast_loss(x, n_data)
    assert jnp.allclose(loss, ref, rtol=1e-4, atol=1e-4), (loss, ref)

    # Case 2: odd batch size (exercises the ragged-tail masked path), 2-D.
    bsz2, k12, n_data2 = 13, 17, 200
    x2 = jax.random.uniform(k2_, (bsz2, k12), dtype=jnp.float32,
                            minval=0.01, maxval=1.0)
    loss2 = jax.block_until_ready(contrast_loss(x2, n_data2))
    ref2 = _reference_contrast_loss(x2, n_data2)
    assert jnp.allclose(loss2, ref2, rtol=1e-4, atol=1e-4), (loss2, ref2)

    # Case 3: force multi-tile + 2-shard grid (tiny tile budget) to exercise
    # the accumulator across reduction steps, the clamped index_map and the
    # fully-out-of-range duplicate tile, even on a single-TensorCore chip.
    bsz3, k13, n_data3 = 20, 17, 97
    x3 = jax.random.uniform(k3_, (bsz3, k13), dtype=jnp.float32,
                            minval=0.01, maxval=1.0)
    loss3 = jax.block_until_ready(
        contrast_loss(x3, n_data3, num_core_shards=2, tile_bytes=4096))
    ref3 = _reference_contrast_loss(x3, n_data3)
    assert jnp.allclose(loss3, ref3, rtol=1e-4, atol=1e-4), (loss3, ref3)

    print("KERNEL_OK")
</pallas_src>

<mosaic_0001>
module attributes {stable_mosaic.version = 11 : i64} {
  func.func @_contrast_loss_kernel(%arg0: i32, %arg1: i32, %arg2: memref<8x17xf32, #tpu.memory_space<vmem>>, %arg3: memref<1x8x128xf32, #tpu.memory_space<vmem>>) attributes {dimension_semantics = [#tpu.dimension_semantics<parallel>, #tpu.dimension_semantics<arbitrary>], iteration_bounds = array<i64: 1, 1>, scalar_prefetch = 0 : i64, scratch_operands = 0 : i64, tpu.core_type = #tpu.core_type<tc>, window_params = [{transform_indices = @transform_0, window_bounds = array<i64: 8, 17>}, {transform_indices = @transform_1, window_bounds = array<i64: 1, 8, 128>}]} {
    %c0_i32 = arith.constant 0 : i32
    %0 = arith.cmpi eq, %arg1, %c0_i32 : i32
    %1 = arith.extui %0 : i1 to i32
    %c0_i32_0 = arith.constant 0 : i32
    %2 = arith.cmpi ne, %1, %c0_i32_0 : i32
    scf.if %2 {
      %cst_6 = arith.constant 0.000000e+00 : f32
      %19 = vector.broadcast %cst_6 : f32 to vector<1x8x128xf32>
      %c0_7 = arith.constant 0 : index
      %c0_8 = arith.constant 0 : index
      %c0_9 = arith.constant 0 : index
      %20 = vector.load %arg3[%c0_7, %c0_8, %c0_9] : memref<1x8x128xf32, #tpu.memory_space<vmem>>, vector<1x8x128xf32>
      tpu.vector_store %arg3[%c0_7, %c0_8, %c0_9], %19 {strides = array<i32>} : memref<1x8x128xf32, #tpu.memory_space<vmem>>, vector<1x8x128xf32>,
    } else {
    }
    %c0 = arith.constant 0 : index
    %c0_1 = arith.constant 0 : index
    %3 = vector.load %arg2[%c0, %c0_1] : memref<8x17xf32, #tpu.memory_space<vmem>>, vector<8x17xf32>
    %cst = arith.constant 0.125000104 : f32
    %4 = vector.broadcast %cst : f32 to vector<8x17xf32>
    %5 = arith.addf %3, %4 : vector<8x17xf32>
    %6 = math.log %5 : vector<8x17xf32>
    %7 = vector.extract_strided_slice %3 {offsets = [0, 0], sizes = [8, 1], strides = [1, 1]} : vector<8x17xf32> to vector<8x1xf32>
    %8 = math.log %7 : vector<8x1xf32>
    %c1_i32 = arith.constant 1 : i32
    %9 = arith.muli %arg0, %c1_i32 : i32
    %10 = arith.addi %9, %arg1 : i32
    %c8_i32 = arith.constant 8 : i32
    %11 = arith.muli %10, %c8_i32 : i32
    %c8_i32_2 = arith.constant 8 : i32
    %12 = arith.addi %11, %c8_i32_2 : i32
    %c8_i32_3 = arith.constant 8 : i32
    %13 = arith.cmpi sle, %12, %c8_i32_3 : i32
    %14 = arith.extui %13 : i1 to i32
    %c0_i32_4 = arith.constant 0 : i32
    %15 = arith.cmpi ne, %14, %c0_i32_4 : i32
    scf.if %15 {
      %c0_6 = arith.constant 0 : index
      %c0_7 = arith.constant 0 : index
      %c0_8 = arith.constant 0 : index
      %19 = vector.load %arg3[%c0_6, %c0_7, %c0_8] : memref<1x8x128xf32, #tpu.memory_space<vmem>>, vector<1x8x128xf32>
      %20 = vector.shape_cast %6 : vector<8x17xf32> to vector<1x8x17xf32>
      %cst_9 = arith.constant dense<0.000000e+00> : vector<1xf32>
      %21 = vector.multi_reduction <add>, %20, %cst_9 [1, 2] : vector<1x8x17xf32> to vector<1xf32>
      %22 = vector.shape_cast %21 : vector<1xf32> to vector<1x1x1xf32>
      %23 = vector.extract %22[0, 0, 0] : f32 from vector<1x1x1xf32>
      %24 = vector.shape_cast %8 : vector<8x1xf32> to vector<1x8x1xf32>
      %cst_10 = arith.constant dense<0.000000e+00> : vector<1xf32>
      %25 = vector.multi_reduction <add>, %24, %cst_10 [1, 2] : vector<1x8x1xf32> to vector<1xf32>
      %26 = vector.shape_cast %25 : vector<1xf32> to vector<1x1x1xf32>
      %27 = vector.extract %26[0, 0, 0] : f32 from vector<1x1x1xf32>
      %28 = arith.subf %23, %27 : f32
      %29 = vector.broadcast %28 : f32 to vector<1x8x128xf32>
      %30 = arith.addf %19, %29 : vector<1x8x128xf32>
      %c0_11 = arith.constant 0 : index
      %c0_12 = arith.constant 0 : index
      %c0_13 = arith.constant 0 : index
      %31 = vector.load %arg3[%c0_11, %c0_12, %c0_13] : memref<1x8x128xf32, #tpu.memory_space<vmem>>, vector<1x8x128xf32>
      tpu.vector_store %arg3[%c0_11, %c0_12, %c0_13], %30 {strides = array<i32>} : memref<1x8x128xf32, #tpu.memory_space<vmem>>, vector<1x8x128xf32>,
    } else {
    }
    %true = arith.constant true
    %16 = arith.xori %13, %true : i1
    %17 = arith.extui %16 : i1 to i32
    %c0_i32_5 = arith.constant 0 : i32
    %18 = arith.cmpi ne, %17, %c0_i32_5 : i32
    scf.if %18 {
      %19 = tpu.iota {dimensions = array<i32: 0>} : vector<8x1xi32>
      %20 = vector.broadcast %11 : i32 to vector<8x1xi32>
      %21 = arith.addi %19, %20 : vector<8x1xi32>
      %c8_i32_6 = arith.constant 8 : i32
      %22 = vector.broadcast %c8_i32_6 : i32 to vector<8x1xi32>
      %23 = arith.cmpi slt, %21, %22 : vector<8x1xi32>
      %cst_7 = arith.constant dense<0.000000e+00> : vector<8xf32>
      %24 = vector.multi_reduction <add>, %6, %cst_7 [1] : vector<8x17xf32> to vector<8xf32>
      %25 = vector.shape_cast %24 : vector<8xf32> to vector<8x1xf32>
      %cst_8 = arith.constant 0.000000e+00 : f32
      %26 = vector.broadcast %cst_8 : f32 to vector<8x1xf32>
      %27 = arith.select %23, %25, %26 : vector<8x1xi1>, vector<8x1xf32>
      %cst_9 = arith.constant 0.000000e+00 : f32
      %28 = vector.broadcast %cst_9 : f32 to vector<8x1xf32>
      %29 = arith.select %23, %8, %28 : vector<8x1xi1>, vector<8x1xf32>
      %c0_10 = arith.constant 0 : index
      %c0_11 = arith.constant 0 : index
      %c0_12 = arith.constant 0 : index
      %30 = vector.load %arg3[%c0_10, %c0_11, %c0_12] : memref<1x8x128xf32, #tpu.memory_space<vmem>>, vector<1x8x128xf32>
      %31 = vector.shape_cast %27 : vector<8x1xf32> to vector<1x8x1xf32>
      %cst_13 = arith.constant dense<0.000000e+00> : vector<1xf32>
      %32 = vector.multi_reduction <add>, %31, %cst_13 [1, 2] : vector<1x8x1xf32> to vector<1xf32>
      %33 = vector.shape_cast %32 : vector<1xf32> to vector<1x1x1xf32>
      %34 = vector.extract %33[0, 0, 0] : f32 from vector<1x1x1xf32>
      %35 = vector.shape_cast %29 : vector<8x1xf32> to vector<1x8x1xf32>
      %cst_14 = arith.constant dense<0.000000e+00> : vector<1xf32>
      %36 = vector.multi_reduction <add>, %35, %cst_14 [1, 2] : vector<1x8x1xf32> to vector<1xf32>
      %37 = vector.shape_cast %36 : vector<1xf32> to vector<1x1x1xf32>
      %38 = vector.extract %37[0, 0, 0] : f32 from vector<1x1x1xf32>
      %39 = arith.subf %34, %38 : f32
      %40 = vector.broadcast %39 : f32 to vector<1x8x128xf32>
      %41 = arith.addf %30, %40 : vector<1x8x128xf32>
      %c0_15 = arith.constant 0 : index
      %c0_16 = arith.constant 0 : index
      %c0_17 = arith.constant 0 : index
      %42 = vector.load %arg3[%c0_15, %c0_16, %c0_17] : memref<1x8x128xf32, #tpu.memory_space<vmem>>, vector<1x8x128xf32>
      tpu.vector_store %arg3[%c0_15, %c0_16, %c0_17], %41 {strides = array<i32>} : memref<1x8x128xf32, #tpu.memory_space<vmem>>, vector<1x8x128xf32>,
    } else {
    }
    return
  }
  func.func @transform_0(%arg0: i32, %arg1: i32) -> (i32, i32) {
    %c1_i32 = arith.constant 1 : i32
    %0 = arith.muli %arg0, %c1_i32 : i32
    %1 = arith.addi %0, %arg1 : i32
    %c0_i32 = arith.constant 0 : i32
    %2 = arith.minsi %1, %c0_i32 : i32
    %c0_i32_0 = arith.constant 0 : i32
    %c0_i32_1 = arith.constant 0 : i32
    return %2, %c0_i32_0 : i32, i32
  }
  func.func @transform_1(%arg0: i32, %arg1: i32) -> (i32, i32, i32) {
    %c0_i32 = arith.constant 0 : i32
    %c0_i32_0 = arith.constant 0 : i32
    %c0_i32_1 = arith.constant 0 : i32
    return %arg0, %c0_i32, %c0_i32_0 : i32, i32, i32
  }
}

</mosaic_0001>

<llo_original>
// kernel: tpu_custom_call.1
$region0: #{tpu_custom_call.1}
  #allocation0 [shape = 'u32[]', space=smem, size = 0x4, offset = 0x4, fixed_abs, tag = 'smem constant byte address 0x4 - core index']
  #allocation1 [shape = 'u32[144,128]{1,0:T(1,128)}', space=vmem, size = 0x12000, scoped, tag = 'internal scratch']
  %s0 = inlined_call_operand.hbm [shape: f32[8,17], index: 0, kind: input, shape index: {}]
  %s1 = inlined_call_operand.hbm [shape: f32[1,8,128], index: 1, kind: output, shape index: {}]
  %s2 = sld [smem:[#allocation0]]
  $region30: #{tpu_custom_call.1} parent=0
    _
  %s4 = ssub.s32 1, %s2
  %s5 = scalar_select 0, %s4, %s2
  $region1: #{tpu_custom_call.1} parent=0
    #allocation2 [shape = 'u8[4096]{0}', space=vmem, size = 0x1000, scoped, tag = 'input window, operand 0, single buffered']
    #allocation3 [shape = 's32[1]{0}', space=sflag, size = 0x4, scoped, tag = 'scoped memory for tpu_custom_call.1']
    #allocation4 [shape = 's32[1]{0}', space=sflag, size = 0x4, scoped, tag = 'scoped memory for tpu_custom_call.1']
    #allocation5 [shape = 'u8[4096]{0}', space=vmem, size = 0x1000, scoped, tag = 'output window, operand 0, single buffered']
    %6 = vsyncpa [#allocation3], 0
    %7 = vsyncpa [#allocation4], 0
    // Predicated region
    $region2: #{tpu_custom_call.1} parent=1 // pred_check
      _
    $region3: #{tpu_custom_call.1} parent=1 // pred_check_branch
      %9 = sbr.rel (0) target = $region5
    $region4: #{tpu_custom_call.1} parent=1 // pred_region
      %s10 = sadd.s32 0, 0
      %p11 = scmp.lt.s32.totalorder %s10, 0
      %s12 = scalar_select %p11, %s10, 0
      %s14 = ssub.s32 128, 128
      %15 = vsyncadd [#allocation3], %s14
      %s16 = smul.addr %s12, 128
      %s17 = scalar_lea.hbm %s0, %s16
      %s19 = sshll.u32 [#allocation2], 4
      %s20 = int_to_ptr.vmem [resolvable:$true] %s19
      %22 = dma.hbm_to_vmem [thread:$0]  %s17, 128, %s20, [#allocation3]
    $region5: #{tpu_custom_call.1} parent=1 // pred_fallthru
      _
    // Predicated region
    $region6: #{tpu_custom_call.1} parent=1 // pred_check
      _
    $region7: #{tpu_custom_call.1} parent=1 // pred_check_branch
      %24 = sbr.rel (0) target = $region9
    $region8: #{tpu_custom_call.1} parent=1 // pred_region
      %25 = dma.done [#allocation3], 128
    $region9: #{tpu_custom_call.1} parent=1 // pred_fallthru
      _
    %s26 = sadd.s32 0, 0
    %p27 = scmp.lt.s32.totalorder %s26, 0
    %s28 = scalar_select %p27, %s26, 0
    %p29 = scmp.eq.s32.totalorder 0, 0
    // Predicated region
    $region10: #{tpu_custom_call.1} parent=1 // pred_check
      %p30 = pneg %p29
    $region11: #{tpu_custom_call.1} parent=1 // pred_check_branch
      %32 = sbr.rel (%p30) target = $region13
    $region12: #{tpu_custom_call.1} parent=1 // pred_region
      %33 = vst [vmem:[#allocation5] sm:$0xff] 0.0
    $region13: #{tpu_custom_call.1} parent=1 // pred_fallthru
      _
    %v34 = vld [vmem:[#allocation2] sm:$0xff]
    %v35 = vadd.f32 %v34, 0.1250001
    %v36 = vlog2.pop %v35
    %v37 = vmul.f32 %v36, 0.6931472
    %v38 = vlog2.pop %v34
    %v39 = vmul.f32 %v38, 0.6931472
    %s40 = sadd.s32 0, 0
    %s41 = smul.u32 %s40, 8
    %s42 = sadd.s32 %s41, 8
    %p43 = scmp.le.s32.totalorder %s42, 8
    // Predicated region
    $region14: #{tpu_custom_call.1} parent=1 // pred_check
      %p44 = pneg %p43
    $region15: #{tpu_custom_call.1} parent=1 // pred_check_branch
      %46 = sbr.rel (%p44) target = $region17
    $region16: #{tpu_custom_call.1} parent=1 // pred_region
      %v47 = vld [vmem:[#allocation5] sm:$0xff]
      %vm48 = vcmask 138240
      %v49 = vsel %vm48, %v37, 0.0
      %50 = vadd.xlane.f32.xlu0 %v49
      %v51 = vpop.xlane.xlu0 %50
      %v52 = vrot.slane %v51, 4
      %v53 = vadd.f32 %v51, %v52
      %v54 = vrot.slane %v53, 2
      %v55 = vadd.f32 %v53, %v54
      %v56 = vrot.slane %v55, 1
      %v57 = vadd.f32 %v55, %v56
      %s58 = vtos %v57
      %vm59 = vcmask 7168
      %v60 = vsel %vm59, %v39, 0.0
      %61 = vadd.xlane.f32.xlu0 %v60
      %v62 = vpop.xlane.xlu0 %61
      %v63 = vrot.slane %v62, 4
      %v64 = vadd.f32 %v62, %v63
      %v65 = vrot.slane %v64, 2
      %v66 = vadd.f32 %v64, %v65
      %v67 = vrot.slane %v66, 1
      %v68 = vadd.f32 %v66, %v67
      %s69 = vtos %v68
      %s70 = ssub.f32 %s58, %s69
      %v71 = vstv %s70
      %v72 = vadd.f32 %v47, %v71
      %73 = vst [vmem:[#allocation5] sm:$0xff] %v72
    $region17: #{tpu_custom_call.1} parent=1 // pred_fallthru
      _
    %p74 = scmp.gt.s32.totalorder %s42, 8
    // Predicated region
    $region18: #{tpu_custom_call.1} parent=1 // pred_check
      %p75 = pneg %p74
    $region19: #{tpu_custom_call.1} parent=1 // pred_check_branch
      %77 = sbr.rel (%p75) target = $region21
    $region20: #{tpu_custom_call.1} parent=1 // pred_region
      %v78 = vlaneseq
      %v79 = vshrl.u32 %v78, 7
      %v80 = vstv %s41
      %v81 = vadd.s32 %v79, %v80
      %vm82 = vcmp.lt.s32.totalorder %v81, 8
      %vm83 = vcmask 138240
      %v84 = vsel %vm83, %v37, 0.0
      %85 = vadd.xlane.f32.xlu0 %v84
      %v86 = vpop.xlane.xlu0 %85
      %v87 = vsel %vm82, %v86, 0.0
      %v88 = vsel %vm82, %v39, 0.0
      %v89 = vld [vmem:[#allocation5] sm:$0xff]
      %vm90 = vcmask 7168
      %v91 = vsel %vm90, %v87, 0.0
      %92 = vadd.xlane.f32.xlu0 %v91
      %v93 = vpop.xlane.xlu0 %92
      %v94 = vrot.slane %v93, 4
      %v95 = vadd.f32 %v93, %v94
      %v96 = vrot.slane %v95, 2
      %v97 = vadd.f32 %v95, %v96
      %v98 = vrot.slane %v97, 1
      %v99 = vadd.f32 %v97, %v98
      %s100 = vtos %v99
      %v101 = vsel %vm90, %v88, 0.0
      %102 = vadd.xlane.f32.xlu0 %v101
      %v103 = vpop.xlane.xlu0 %102
      %v104 = vrot.slane %v103, 4
      %v105 = vadd.f32 %v103, %v104
      %v106 = vrot.slane %v105, 2
      %v107 = vadd.f32 %v105, %v106
      %v108 = vrot.slane %v107, 1
      %v109 = vadd.f32 %v107, %v108
      %s110 = vtos %v109
      %s111 = ssub.f32 %s100, %s110
      %v112 = vstv %s111
      %v113 = vadd.f32 %v89, %v112
      %114 = vst [vmem:[#allocation5] sm:$0xff] %v113
    $region21: #{tpu_custom_call.1} parent=1 // pred_fallthru
      _
    // Predicated region
    $region22: #{tpu_custom_call.1} parent=1 // pred_check
      _
    $region23: #{tpu_custom_call.1} parent=1 // pred_check_branch
      %116 = sbr.rel (0) target = $region25
    $region24: #{tpu_custom_call.1} parent=1 // pred_region
      %s118 = ssub.s32 128, 128
      %119 = vsyncadd [#allocation4], %s118
      %s121 = sshll.u32 [#allocation5], 4
      %s122 = int_to_ptr.vmem [resolvable:$true] %s121
      %124 = dma.vmem_to_hbm [thread:$0]  %s122, 128, %s1, [#allocation4]
    $region25: #{tpu_custom_call.1} parent=1 // pred_fallthru
      _
    // Predicated region
    $region26: #{tpu_custom_call.1} parent=1 // pred_check
      _
    $region27: #{tpu_custom_call.1} parent=1 // pred_check_branch
      %126 = sbr.rel (0) target = $region29
    $region28: #{tpu_custom_call.1} parent=1 // pred_region
      %127 = dma.done [#allocation4], 128
    $region29: #{tpu_custom_call.1} parent=1 // pred_fallthru
      _
    %128 = vsyncpa [#allocation3], 1
    %129 = vsyncpa [#allocation4], 1

</llo_original>
